<compile_context>
chip_gen: v5e
topology: v5e:2x2
jax: 0.10.0
libtpu: 0.0.40
codegen_flags: <defaults>
</compile_context>

<pallas_src>
import functools
import math

import jax
import jax.numpy as jnp
from jax import lax
from jax.experimental import pallas as pl
from jax.experimental.pallas import tpu as pltpu


# ----------------------------------------------------------------------------
# vMF KL constant (same formula as vMF._vmf_kld, Bessel I_v via series so we
# do not depend on scipy).  Pure host-side Python; compile-time scalar.
# ----------------------------------------------------------------------------
def _log_bessel_iv(v, x, terms=80):
    logs = []
    for m in range(terms):
        logs.append((2 * m + v) * math.log(x / 2.0)
                    - math.lgamma(m + 1)
                    - math.lgamma(m + v + 1))
    mx = max(logs)
    return mx + math.log(sum(math.exp(t - mx) for t in logs))


def vmf_kld_const(kappa, d):
    log_iv = _log_bessel_iv(d / 2.0, kappa)
    log_iv_p1 = _log_bessel_iv(d / 2.0 + 1.0, kappa)
    iv_ratio = math.exp(log_iv_p1 - log_iv)
    return (kappa * iv_ratio
            + d * math.log(kappa) / 2.0
            + log_iv
            - math.lgamma(d / 2.0 + 1.0)
            - d * math.log(2.0) / 2.0)


# ----------------------------------------------------------------------------
# vMF weight `w` rejection sampling (Wood 1994), vectorized with lax.while_loop.
# TODO(synk): data-dependent rejection loop has no clean in-kernel Pallas
# equivalent; it stays in plain JAX glue and only feeds scalars into the kernel.
# ----------------------------------------------------------------------------
def sample_vmf_weight(key, kappa, dim, shape):
    d = float(dim - 1)
    b = d / (math.sqrt(4.0 * kappa * kappa + d * d) + 2.0 * kappa)
    x = (1.0 - b) / (1.0 + b)
    c = kappa * x + d * math.log(1.0 - x * x)

    def cond(state):
        _, _, done = state
        return jnp.logical_not(jnp.all(done))

    def body(state):
        k, w, done = state
        k, k1, k2 = jax.random.split(k, 3)
        z = jax.random.beta(k1, d / 2.0, d / 2.0, shape).astype(jnp.float32)
        w_prop = (1.0 - (1.0 + b) * z) / (1.0 - (1.0 - b) * z)
        u = jax.random.uniform(k2, shape, minval=1e-10, maxval=1.0)
        accept = (kappa * w_prop + d * jnp.log(1.0 - x * w_prop) - c) >= jnp.log(u)
        w = jnp.where(jnp.logical_and(accept, jnp.logical_not(done)), w_prop, w)
        done = jnp.logical_or(done, accept)
        return k, w, done

    init = (key, jnp.zeros(shape, jnp.float32), jnp.zeros(shape, bool))
    _, w, _ = lax.while_loop(cond, body, init)
    return w


def _pad_lanes(x, width):
    """Zero-pad the last (lane) dim of x up to `width` (trace-time branch)."""
    pad = width - x.shape[-1]
    if pad == 0:
        return x
    return jnp.concatenate([x, jnp.zeros(x.shape[:-1] + (pad,), x.dtype)], axis=-1)


# ----------------------------------------------------------------------------
# Pallas kernel: masked-mean pooling (one block-diagonal MXU matmul) + split
# encoder projection + vMF mu / redundant_norm + vMF sample combine.
# Gridless: everything fits one VMEM block at these toy sizes.
# ----------------------------------------------------------------------------
def vae_encoder_kernel(
    src_emb_ref, tmp_emb_ref,      # [B*S, E] embeddings (gathered in the wrapper)
    consts_ref,                    # [8, 128] packed small constants (see wrapper)
    w_enc_ref, w_mu_ref,           # [2E, H] fused encoder weight, [H, L] mu weight
    out_ref,                       # [OUT_R, OUT_C] packed output slab
    *, B, S, N,
):
    BS, E = src_emb_ref.shape
    H = w_enc_ref.shape[1]
    L = w_mu_ref.shape[1]
    BN = B * N
    R = consts_ref.shape[0]

    # --- unpack the packed small-constants slab (static ref-view slices) ----
    src_len = consts_ref[0:B, 0:1].astype(jnp.int32)     # [B,1] exact small ints
    tmp_len = consts_ref[0:B, 1:2].astype(jnp.int32)
    src_inv = consts_ref[0:B, 2:3]                       # 1/max(len,1), precomputed
    tmp_inv = consts_ref[0:B, 3:4]
    w = consts_ref[0:BN, 4:5]                            # [BN,1] vMF rejection weight
    w_comp = consts_ref[0:BN, 5:6]                       # [BN,1] sqrt(1-w^2), host-side
    eps = consts_ref[0:BN, 8:8 + L]                      # [BN,L] gaussian noise
    b_enc = consts_ref[R - 2:R - 1, 0:H]                 # [1,H]
    b_mu = consts_ref[R - 1:R, 0:L]                      # [1,L]

    # --- masked mean pooling as one block-diagonal matmul --------------------
    # pool[b] = (1/len_b) * sum_{s < len_b} emb[b, s]  ==  W[b, :] @ emb_flat
    col = lax.broadcasted_iota(jnp.int32, (B, BS), 1)
    row = lax.broadcasted_iota(jnp.int32, (B, BS), 0)
    s_pos = col - row * S                                # int position within seq b
    in_row = (s_pos >= 0) & (s_pos < S)                  # block-diagonal support
    src_w = (in_row & (s_pos < src_len)).astype(jnp.float32) * src_inv   # [B, B*S]
    tmp_w = (in_row & (s_pos < tmp_len)).astype(jnp.float32) * tmp_inv
    # TODO(synk): at production B/S this block-diagonal weight is O(B^2*S) VMEM and
    # O(B^2*S*E) MXU work — switch to a batch-tiled grid ([tile_B, S] @ [S, E] per
    # step), dimension_semantics=("parallel", ...) for v7x's 2nd TC, tiles sized
    # for v7x's 64 MiB VMEM, and bf16 embedding DMA with f32 accumulation.
    src_pool = jnp.dot(src_w, src_emb_ref[...], preferred_element_type=jnp.float32)
    tmp_pool = jnp.dot(tmp_w, tmp_emb_ref[...], preferred_element_type=jnp.float32)

    # --- fused encoder hidden code: tanh(src_pool@W_top + tmp_pool@W_bot + b) -
    # split-weight dots (sublane-aligned static views) instead of lane-concatenating
    # the pooled vectors; two K=E dots cost the same on the MXU as one K=2E dot.
    w_top = w_enc_ref[0:E, :]
    w_bot = w_enc_ref[E:2 * E, :]
    h = jnp.tanh(
        jnp.dot(src_pool, w_top, preferred_element_type=jnp.float32)
        + jnp.dot(tmp_pool, w_bot, preferred_element_type=jnp.float32)
        + b_enc)                                         # [B, H]

    # --- vMF.estimate_param ---------------------------------------------------
    mu_raw = jnp.dot(h, w_mu_ref[...], preferred_element_type=jnp.float32) + b_mu
    sq = jnp.sum(mu_raw * mu_raw, axis=-1, keepdims=True)      # [B,1]
    mu = mu_raw * lax.rsqrt(sq + 1e-12)                        # EUP rsqrt, eps guard
    rnorm = (jnp.sqrt(sq + 1e-12) - 1.0) ** 2                  # [B,1]

    # --- vMF.sample_cell, 2D-flattened over (batch, nsamples) ----------------
    # per-sample mu broadcast: rows b*N..b*N+N-1 <- mu[b]; static sublane slices +
    # one sublane concat — no MXU selector dot.
    # TODO(synk): at production B*N replace the unrolled concat with a stride-0
    # sublane-broadcast read (pl.ds(..., stride=0)) of a mu scratch.
    mu_bn = jnp.concatenate(
        [mu[b:b + 1, :] for b in range(B) for _ in range(N)], axis=0)   # [BN, L]

    proj = jnp.sum(eps * mu_bn, axis=-1, keepdims=True)        # [BN,1]
    v = eps - proj * mu_bn
    v = v * lax.rsqrt(jnp.sum(v * v, axis=-1, keepdims=True) + 1e-12)
    z = w * mu_bn + w_comp * v                                 # [BN, L] (unit norm)

    # --- single lane-dense packed store ---------------------------------------
    OUT_R, OUT_C = out_ref.shape
    stats = jnp.concatenate([mu, rnorm], axis=-1)              # [B, L+1]
    pieces = [_pad_lanes(z, OUT_C), _pad_lanes(stats, OUT_C)]
    pad_rows = OUT_R - (BN + B)
    if pad_rows:
        pieces.append(jnp.zeros((pad_rows, OUT_C), jnp.float32))
    out_ref[...] = jnp.concatenate(pieces, axis=0)


# ----------------------------------------------------------------------------
# Wrapper (glue: embedding gather, RNG, constant packing, pallas_call, unpack)
# ----------------------------------------------------------------------------
def vae_encoder_forward(params, src_tokens, src_lengths, temp_tokens, temp_lengths,
                        *, nsamples, kappa, key):
    B, S = src_tokens.shape
    E = params["emb_src"].shape[1]
    H = params["w_enc"].shape[1]
    L = params["w_mu"].shape[1]
    N = nsamples
    BN = B * N

    # TODO(synk): at production embedding widths move this gather in-kernel
    # (scalar-prefetch tokens + pl.ANY HBM tables + per-row async DMA) so the
    # [B*S, E] intermediate never hits HBM; negligible at toy sizes.
    src_emb = params["emb_src"][src_tokens.reshape(-1)]      # [B*S, E]
    tmp_emb = params["emb_tmp"][temp_tokens.reshape(-1)]     # [B*S, E]
    # TODO(synk): at production E/S cast src_emb/tmp_emb (and eps) to bf16 for the
    # HBM->VMEM DMA, keeping f32 MXU accumulation; kept f32 here for bit-parity.

    kw, ke = jax.random.split(key)
    w = sample_vmf_weight(kw, kappa, L, (BN,))                # [BN]
    w_comp = jnp.sqrt(jnp.maximum(1.0 - w * w, 0.0))          # host-side, fuses w/ RNG
    eps = jax.random.normal(ke, (BN, L), jnp.float32)         # [BN, L]

    # --- one [8,128] "small constants" slab: lengths, reciprocals, w, sqrt(1-w^2),
    # --- both biases and the eps block -> a single input DMA pipeline.
    CR, CC = 8, 128
    assert B <= CR - 2 and BN <= CR - 2, "toy-shape packing: B and B*nsamples must be <= 6"
    assert H <= CC and L <= CC and 8 + L <= CC, "toy-shape packing: H and L must fit 128 lanes"
    src_len = src_lengths.astype(jnp.float32)
    tmp_len = temp_lengths.astype(jnp.float32)
    consts = jnp.zeros((CR, CC), jnp.float32)
    consts = consts.at[0:B, 0].set(src_len)
    consts = consts.at[0:B, 1].set(tmp_len)
    consts = consts.at[0:B, 2].set(1.0 / jnp.maximum(src_len, 1.0))
    consts = consts.at[0:B, 3].set(1.0 / jnp.maximum(tmp_len, 1.0))
    consts = consts.at[0:BN, 4].set(w)
    consts = consts.at[0:BN, 5].set(w_comp)
    consts = consts.at[0:BN, 8:8 + L].set(eps)
    consts = consts.at[CR - 2, 0:H].set(params["b_enc"].reshape(-1))
    consts = consts.at[CR - 1, 0:L].set(params["b_mu"].reshape(-1))

    OUT_R = max(8, ((BN + B + 7) // 8) * 8)
    OUT_C = max(128, pl.cdiv(L + 1, 128) * 128)

    # Advisory cost estimate so XLA schedules the surrounding gather / RNG /
    # rejection-sampling ops around this tiny fixed-latency call.
    flops = 2 * (2 * B * (B * S) * E + 2 * B * E * H + B * H * L) + 12 * BN * L
    bytes_accessed = 4 * (2 * B * S * E + 2 * E * H + H * L + CR * CC + OUT_R * OUT_C)
    ce = pl.CostEstimate(flops=flops,
                         transcendentals=B * H + 2 * B + BN,
                         bytes_accessed=bytes_accessed)

    vmem = pl.BlockSpec(memory_space=pltpu.MemorySpace.VMEM)
    out_slab = pl.pallas_call(
        functools.partial(vae_encoder_kernel, B=B, S=S, N=N),
        out_shape=jax.ShapeDtypeStruct((OUT_R, OUT_C), jnp.float32),
        in_specs=[vmem] * 5,
        out_specs=vmem,
        cost_estimate=ce,
    )(src_emb, tmp_emb, consts, params["w_enc"], params["w_mu"])

    z = out_slab[0:BN, 0:L].reshape(B, N, L)
    mu = out_slab[BN:BN + B, 0:L]
    rnorm = out_slab[BN:BN + B, L:L + 1]

    # KL of a vMF posterior vs the uniform prior depends only on (kappa, dim):
    # compile-time constant, never enters the kernel.
    kl = jnp.full((B,), vmf_kld_const(kappa, L), jnp.float32)

    ret_dict = {
        "mu": mu,
        # Matches vMF.estimate_param in the reference, which literally returns
        # torch.ones_like(mu) for 'norm' (redundant_norm carries the deviation).
        "norm": jnp.ones_like(mu),
        "redundant_norm": rnorm,
        "kappa": kappa,
    }
    return z, kl, ret_dict


def init_params(key, vocab, embed_dim, hidden_dim, latent_dim):
    ks = jax.random.split(key, 5)
    scale_e = 1.0 / math.sqrt(embed_dim)
    scale_h = 1.0 / math.sqrt(2 * embed_dim)
    scale_m = 1.0 / math.sqrt(hidden_dim)
    return {
        "emb_src": jax.random.normal(ks[0], (vocab, embed_dim), jnp.float32) * scale_e,
        "emb_tmp": jax.random.normal(ks[1], (vocab, embed_dim), jnp.float32) * scale_e,
        # fused Linear(2E, H): rows 0..E-1 act on the src pool, rows E..2E-1 on tmp
        "w_enc":   jax.random.normal(ks[2], (2 * embed_dim, hidden_dim), jnp.float32) * scale_h,
        "b_enc":   jnp.zeros((1, hidden_dim), jnp.float32),
        "w_mu":    jax.random.normal(ks[3], (hidden_dim, latent_dim), jnp.float32) * scale_m,
        "b_mu":    jnp.zeros((1, latent_dim), jnp.float32),
    }


if __name__ == "__main__":
    B, S, V = 2, 8, 100
    E, H, L = 16, 32, 16       # embed, hidden_dim, latent_dim
    N = 2                       # nsamples
    kappa = 1.0

    key = jax.random.PRNGKey(0)
    k_tok_s, k_tok_t, k_par, k_rng = jax.random.split(key, 4)

    src_tokens = jax.random.randint(k_tok_s, (B, S), 0, V, dtype=jnp.int32)
    temp_tokens = jax.random.randint(k_tok_t, (B, S), 0, V, dtype=jnp.int32)
    src_lengths = jnp.array([8, 5], dtype=jnp.int32)
    temp_lengths = jnp.array([6, 8], dtype=jnp.int32)

    params = init_params(k_par, V, E, H, L)

    z, KL, ret_dict = vae_encoder_forward(
        params, src_tokens, src_lengths, temp_tokens, temp_lengths,
        nsamples=N, kappa=kappa, key=k_rng)
    jax.block_until_ready((z, KL, ret_dict))

    assert z.shape == (B, N, L)
    assert KL.shape == (B,)
    assert ret_dict["mu"].shape == (B, L)
    assert ret_dict["redundant_norm"].shape == (B, 1)
    assert bool(jnp.all(jnp.isfinite(z)))
    assert bool(jnp.all(jnp.isfinite(ret_dict["mu"])))
    # samples must lie on the unit sphere (vMF support)
    assert bool(jnp.allclose(jnp.linalg.norm(z, axis=-1), 1.0, atol=1e-4))
    # mu is L2-normalized
    assert bool(jnp.allclose(jnp.linalg.norm(ret_dict["mu"], axis=-1), 1.0, atol=1e-4))

    print("KERNEL_OK")
</pallas_src>

<mosaic_0001>
module attributes {stable_mosaic.version = 11 : i64} {
  func.func @vae_encoder_kernel(%arg0: memref<16x16xf32, #tpu.memory_space<vmem>>, %arg1: memref<16x16xf32, #tpu.memory_space<vmem>>, %arg2: memref<8x128xf32, #tpu.memory_space<vmem>>, %arg3: memref<32x32xf32, #tpu.memory_space<vmem>>, %arg4: memref<32x16xf32, #tpu.memory_space<vmem>>, %arg5: memref<8x128xf32, #tpu.memory_space<vmem>>) attributes {dimension_semantics = [], scalar_prefetch = 0 : i64, scratch_operands = 0 : i64, tpu.core_type = #tpu.core_type<tc>} {
    %c0 = arith.constant 0 : index
    %c0_0 = arith.constant 0 : index
    %0 = vector.load %arg2[%c0, %c0_0] : memref<8x128xf32, #tpu.memory_space<vmem>>, vector<2x1xf32>
    %1 = arith.fptosi %0 : vector<2x1xf32> to vector<2x1xi32>
    %c0_1 = arith.constant 0 : index
    %c1 = arith.constant 1 : index
    %2 = vector.load %arg2[%c0_1, %c1] : memref<8x128xf32, #tpu.memory_space<vmem>>, vector<2x1xf32>
    %3 = arith.fptosi %2 : vector<2x1xf32> to vector<2x1xi32>
    %c0_2 = arith.constant 0 : index
    %c2 = arith.constant 2 : index
    %4 = vector.load %arg2[%c0_2, %c2] : memref<8x128xf32, #tpu.memory_space<vmem>>, vector<2x1xf32>
    %c0_3 = arith.constant 0 : index
    %c3 = arith.constant 3 : index
    %5 = vector.load %arg2[%c0_3, %c3] : memref<8x128xf32, #tpu.memory_space<vmem>>, vector<2x1xf32>
    %c0_4 = arith.constant 0 : index
    %c4 = arith.constant 4 : index
    %6 = vector.load %arg2[%c0_4, %c4] : memref<8x128xf32, #tpu.memory_space<vmem>>, vector<4x1xf32>
    %c0_5 = arith.constant 0 : index
    %c5 = arith.constant 5 : index
    %7 = vector.load %arg2[%c0_5, %c5] : memref<8x128xf32, #tpu.memory_space<vmem>>, vector<4x1xf32>
    %c0_6 = arith.constant 0 : index
    %c8 = arith.constant 8 : index
    %8 = vector.load %arg2[%c0_6, %c8] : memref<8x128xf32, #tpu.memory_space<vmem>>, vector<4x16xf32>
    %c6 = arith.constant 6 : index
    %c0_7 = arith.constant 0 : index
    %9 = vector.load %arg2[%c6, %c0_7] : memref<8x128xf32, #tpu.memory_space<vmem>>, vector<1x32xf32>
    %c7 = arith.constant 7 : index
    %c0_8 = arith.constant 0 : index
    %10 = vector.load %arg2[%c7, %c0_8] : memref<8x128xf32, #tpu.memory_space<vmem>>, vector<1x16xf32>
    %11 = tpu.iota {dimensions = array<i32: 1>} : vector<2x16xi32>
    %12 = tpu.iota {dimensions = array<i32: 0>} : vector<2x16xi32>
    %c8_i32 = arith.constant 8 : i32
    %13 = vector.broadcast %c8_i32 : i32 to vector<2x16xi32>
    %14 = arith.muli %12, %13 : vector<2x16xi32>
    %15 = arith.subi %11, %14 : vector<2x16xi32>
    %c0_i32 = arith.constant 0 : i32
    %16 = vector.broadcast %c0_i32 : i32 to vector<2x16xi32>
    %17 = arith.cmpi sge, %15, %16 : vector<2x16xi32>
    %c8_i32_9 = arith.constant 8 : i32
    %18 = vector.broadcast %c8_i32_9 : i32 to vector<2x16xi32>
    %19 = arith.cmpi slt, %15, %18 : vector<2x16xi32>
    %20 = arith.andi %17, %19 : vector<2x16xi1>
    %21 = vector.broadcast %1 : vector<2x1xi32> to vector<2x16xi32>
    %22 = arith.cmpi slt, %15, %21 : vector<2x16xi32>
    %23 = arith.andi %20, %22 : vector<2x16xi1>
    %24 = arith.extui %23 : vector<2x16xi1> to vector<2x16xi32>
    %25 = arith.sitofp %24 : vector<2x16xi32> to vector<2x16xf32>
    %26 = vector.broadcast %4 : vector<2x1xf32> to vector<2x16xf32>
    %27 = arith.mulf %25, %26 : vector<2x16xf32>
    %28 = vector.broadcast %3 : vector<2x1xi32> to vector<2x16xi32>
    %29 = arith.cmpi slt, %15, %28 : vector<2x16xi32>
    %30 = arith.andi %20, %29 : vector<2x16xi1>
    %31 = arith.extui %30 : vector<2x16xi1> to vector<2x16xi32>
    %32 = arith.sitofp %31 : vector<2x16xi32> to vector<2x16xf32>
    %33 = vector.broadcast %5 : vector<2x1xf32> to vector<2x16xf32>
    %34 = arith.mulf %32, %33 : vector<2x16xf32>
    %c0_10 = arith.constant 0 : index
    %c0_11 = arith.constant 0 : index
    %35 = vector.load %arg0[%c0_10, %c0_11] : memref<16x16xf32, #tpu.memory_space<vmem>>, vector<16x16xf32>
    %cst = arith.constant dense<0.000000e+00> : vector<2x16xf32>
    %36 = tpu.matmul %27, %35, %cst {dimension_numbers = #tpu.dot_dimension_numbers<[1], [0], [0], [1], [0, 0, 1, 1], [], []>} : vector<2x16xf32>, vector<16x16xf32>, vector<2x16xf32> -> vector<2x16xf32>
    %c0_12 = arith.constant 0 : index
    %c0_13 = arith.constant 0 : index
    %37 = vector.load %arg1[%c0_12, %c0_13] : memref<16x16xf32, #tpu.memory_space<vmem>>, vector<16x16xf32>
    %cst_14 = arith.constant dense<0.000000e+00> : vector<2x16xf32>
    %38 = tpu.matmul %34, %37, %cst_14 {dimension_numbers = #tpu.dot_dimension_numbers<[1], [0], [0], [1], [0, 0, 1, 1], [], []>} : vector<2x16xf32>, vector<16x16xf32>, vector<2x16xf32> -> vector<2x16xf32>
    %c0_15 = arith.constant 0 : index
    %c0_16 = arith.constant 0 : index
    %39 = vector.load %arg3[%c0_15, %c0_16] : memref<32x32xf32, #tpu.memory_space<vmem>>, vector<16x32xf32>
    %c16 = arith.constant 16 : index
    %c0_17 = arith.constant 0 : index
    %40 = vector.load %arg3[%c16, %c0_17] : memref<32x32xf32, #tpu.memory_space<vmem>>, vector<16x32xf32>
    %cst_18 = arith.constant dense<0.000000e+00> : vector<2x32xf32>
    %41 = tpu.matmul %36, %39, %cst_18 {dimension_numbers = #tpu.dot_dimension_numbers<[1], [0], [0], [1], [0, 0, 1, 1], [], []>} : vector<2x16xf32>, vector<16x32xf32>, vector<2x32xf32> -> vector<2x32xf32>
    %cst_19 = arith.constant dense<0.000000e+00> : vector<2x32xf32>
    %42 = tpu.matmul %38, %40, %cst_19 {dimension_numbers = #tpu.dot_dimension_numbers<[1], [0], [0], [1], [0, 0, 1, 1], [], []>} : vector<2x16xf32>, vector<16x32xf32>, vector<2x32xf32> -> vector<2x32xf32>
    %43 = arith.addf %41, %42 : vector<2x32xf32>
    %44 = vector.broadcast %9 : vector<1x32xf32> to vector<2x32xf32>
    %45 = arith.addf %43, %44 : vector<2x32xf32>
    %46 = math.tanh %45 : vector<2x32xf32>
    %c0_20 = arith.constant 0 : index
    %c0_21 = arith.constant 0 : index
    %47 = vector.load %arg4[%c0_20, %c0_21] : memref<32x16xf32, #tpu.memory_space<vmem>>, vector<32x16xf32>
    %cst_22 = arith.constant dense<0.000000e+00> : vector<2x16xf32>
    %48 = tpu.matmul %46, %47, %cst_22 {dimension_numbers = #tpu.dot_dimension_numbers<[1], [0], [0], [1], [0, 0, 1, 1], [], []>} : vector<2x32xf32>, vector<32x16xf32>, vector<2x16xf32> -> vector<2x16xf32>
    %49 = vector.broadcast %10 : vector<1x16xf32> to vector<2x16xf32>
    %50 = arith.addf %48, %49 : vector<2x16xf32>
    %51 = arith.mulf %50, %50 : vector<2x16xf32>
    %cst_23 = arith.constant dense<0.000000e+00> : vector<2xf32>
    %52 = vector.multi_reduction <add>, %51, %cst_23 [1] : vector<2x16xf32> to vector<2xf32>
    %53 = vector.shape_cast %52 : vector<2xf32> to vector<2x1xf32>
    %cst_24 = arith.constant 9.99999996E-13 : f32
    %54 = vector.broadcast %cst_24 : f32 to vector<2x1xf32>
    %55 = arith.addf %53, %54 : vector<2x1xf32>
    %56 = math.rsqrt %55 : vector<2x1xf32>
    %57 = vector.broadcast %56 : vector<2x1xf32> to vector<2x16xf32>
    %58 = arith.mulf %50, %57 : vector<2x16xf32>
    %cst_25 = arith.constant 9.99999996E-13 : f32
    %59 = vector.broadcast %cst_25 : f32 to vector<2x1xf32>
    %60 = arith.addf %53, %59 : vector<2x1xf32>
    %61 = math.sqrt %60 : vector<2x1xf32>
    %cst_26 = arith.constant 1.000000e+00 : f32
    %62 = vector.broadcast %cst_26 : f32 to vector<2x1xf32>
    %63 = arith.subf %61, %62 : vector<2x1xf32>
    %64 = arith.mulf %63, %63 : vector<2x1xf32>
    %65 = vector.extract_strided_slice %58 {offsets = [0, 0], sizes = [1, 16], strides = [1, 1]} : vector<2x16xf32> to vector<1x16xf32>
    %66 = vector.extract_strided_slice %58 {offsets = [0, 0], sizes = [1, 16], strides = [1, 1]} : vector<2x16xf32> to vector<1x16xf32>
    %67 = vector.extract_strided_slice %58 {offsets = [1, 0], sizes = [1, 16], strides = [1, 1]} : vector<2x16xf32> to vector<1x16xf32>
    %68 = vector.extract_strided_slice %58 {offsets = [1, 0], sizes = [1, 16], strides = [1, 1]} : vector<2x16xf32> to vector<1x16xf32>
    %69 = tpu.concatenate %65, %66, %67, %68 in 0 : vector<1x16xf32>, vector<1x16xf32>, vector<1x16xf32>, vector<1x16xf32> -> vector<4x16xf32>
    %70 = arith.mulf %8, %69 : vector<4x16xf32>
    %cst_27 = arith.constant dense<0.000000e+00> : vector<4xf32>
    %71 = vector.multi_reduction <add>, %70, %cst_27 [1] : vector<4x16xf32> to vector<4xf32>
    %72 = vector.shape_cast %71 : vector<4xf32> to vector<4x1xf32>
    %73 = vector.broadcast %72 : vector<4x1xf32> to vector<4x16xf32>
    %74 = arith.mulf %73, %69 : vector<4x16xf32>
    %75 = arith.subf %8, %74 : vector<4x16xf32>
    %76 = arith.mulf %75, %75 : vector<4x16xf32>
    %cst_28 = arith.constant dense<0.000000e+00> : vector<4xf32>
    %77 = vector.multi_reduction <add>, %76, %cst_28 [1] : vector<4x16xf32> to vector<4xf32>
    %78 = vector.shape_cast %77 : vector<4xf32> to vector<4x1xf32>
    %cst_29 = arith.constant 9.99999996E-13 : f32
    %79 = vector.broadcast %cst_29 : f32 to vector<4x1xf32>
    %80 = arith.addf %78, %79 : vector<4x1xf32>
    %81 = math.rsqrt %80 : vector<4x1xf32>
    %82 = vector.broadcast %81 : vector<4x1xf32> to vector<4x16xf32>
    %83 = arith.mulf %75, %82 : vector<4x16xf32>
    %84 = vector.broadcast %6 : vector<4x1xf32> to vector<4x16xf32>
    %85 = arith.mulf %84, %69 : vector<4x16xf32>
    %86 = vector.broadcast %7 : vector<4x1xf32> to vector<4x16xf32>
    %87 = arith.mulf %86, %83 : vector<4x16xf32>
    %88 = arith.addf %85, %87 : vector<4x16xf32>
    %89 = tpu.concatenate %58, %64 in 1 : vector<2x16xf32>, vector<2x1xf32> -> vector<2x17xf32>
    %cst_30 = arith.constant 0.000000e+00 : f32
    %90 = vector.broadcast %cst_30 : f32 to vector<4x112xf32>
    %91 = tpu.concatenate %88, %90 in 1 : vector<4x16xf32>, vector<4x112xf32> -> vector<4x128xf32>
    %cst_31 = arith.constant 0.000000e+00 : f32
    %92 = vector.broadcast %cst_31 : f32 to vector<2x111xf32>
    %93 = tpu.concatenate %89, %92 in 1 : vector<2x17xf32>, vector<2x111xf32> -> vector<2x128xf32>
    %cst_32 = arith.constant 0.000000e+00 : f32
    %94 = vector.broadcast %cst_32 : f32 to vector<2x128xf32>
    %95 = tpu.concatenate %91, %93, %94 in 0 : vector<4x128xf32>, vector<2x128xf32>, vector<2x128xf32> -> vector<8x128xf32>
    %c0_33 = arith.constant 0 : index
    %c0_34 = arith.constant 0 : index
    %96 = vector.load %arg5[%c0_33, %c0_34] : memref<8x128xf32, #tpu.memory_space<vmem>>, vector<8x128xf32>
    tpu.vector_store %arg5[%c0_33, %c0_34], %95 {strides = array<i32>} : memref<8x128xf32, #tpu.memory_space<vmem>>, vector<8x128xf32>,
    return
  }
}

</mosaic_0001>

<llo_original>
// kernel: tpu_custom_call.1
$region0: #{tpu_custom_call.1}
  #allocation0 [shape = 'u32[]', space=smem, size = 0x4, offset = 0x4, fixed_abs, tag = 'smem constant byte address 0x4 - core index']
  #allocation1 [shape = 'u32[72,128]{1,0:T(1,128)}', space=vmem, size = 0x9000, scoped, tag = 'internal scratch']
  %s0 = inlined_call_operand.vmem [shape: f32[16,16], index: 0, kind: input, shape index: {}]
  %s1 = inlined_call_operand.hbm [shape: f32[16,16], index: 1, kind: input, shape index: {}]
  %s2 = inlined_call_operand.hbm [shape: f32[8,128], index: 2, kind: input, shape index: {}]
  %s3 = inlined_call_operand.vmem [shape: f32[32,32], index: 3, kind: input, shape index: {}]
  %s4 = inlined_call_operand.vmem [shape: f32[32,16], index: 4, kind: input, shape index: {}]
  %s5 = inlined_call_operand.hbm [shape: f32[8,128], index: 5, kind: output, shape index: {}]
  %s6 = sld [smem:[#allocation0]]
  $region38: #{tpu_custom_call.1} parent=0
    _
  %s8 = ssub.s32 1, %s6
  %s9 = scalar_select 0, %s8, %s6
  $region1: #{tpu_custom_call.1} parent=0
    #allocation2 [shape = 'u8[8192]{0}', space=vmem, size = 0x2000, scoped, tag = 'input window, operand 1, single buffered']
    #allocation3 [shape = 's32[1]{0}', space=sflag, size = 0x4, scoped, tag = 'scoped memory for tpu_custom_call.1']
    #allocation4 [shape = 's32[1]{0}', space=sflag, size = 0x4, scoped, tag = 'scoped memory for tpu_custom_call.1']
    #allocation5 [shape = 'u8[4096]{0}', space=vmem, size = 0x1000, scoped, tag = 'input window, operand 2, single buffered']
    #allocation6 [shape = 's32[1]{0}', space=sflag, size = 0x4, scoped, tag = 'scoped memory for tpu_custom_call.1']
    #allocation7 [shape = 'u8[4096]{0}', space=vmem, size = 0x1000, scoped, tag = 'output window, operand 0, single buffered']
    %10 = vsyncpa [#allocation3], 0
    %11 = vsyncpa [#allocation6], 0
    %12 = vsyncpa [#allocation4], 0
    // Predicated region
    $region2: #{tpu_custom_call.1} parent=1 // pred_check
      _
    $region3: #{tpu_custom_call.1} parent=1 // pred_check_branch
      %14 = sbr.rel (0) target = $region5
    $region4: #{tpu_custom_call.1} parent=1 // pred_region
      _
    $region5: #{tpu_custom_call.1} parent=1 // pred_fallthru
      _
    // Predicated region
    $region6: #{tpu_custom_call.1} parent=1 // pred_check
      _
    $region7: #{tpu_custom_call.1} parent=1 // pred_check_branch
      %16 = sbr.rel (0) target = $region9
    $region8: #{tpu_custom_call.1} parent=1 // pred_region
      %18 = vsyncadd [#allocation3], 0
      %s19 = sshll.u32 %s1, 4
      %s20 = int_to_ptr.hbm [resolvable:$true] %s19
      %s21 = sshll.u32 [#allocation2], 4
      %s22 = int_to_ptr.vmem [resolvable:$true] %s21
      %27 = dma.hbm_to_vmem [thread:$0]  %s20, 256, %s22, [#allocation3], 128, 128, 8
    $region9: #{tpu_custom_call.1} parent=1 // pred_fallthru
      _
    // Predicated region
    $region10: #{tpu_custom_call.1} parent=1 // pred_check
      _
    $region11: #{tpu_custom_call.1} parent=1 // pred_check_branch
      %29 = sbr.rel (0) target = $region13
    $region12: #{tpu_custom_call.1} parent=1 // pred_region
      %31 = vsyncadd [#allocation6], 0
      %s33 = sshll.u32 %s2, 4
      %s34 = int_to_ptr.hbm [resolvable:$true] %s33
      %s35 = sshll.u32 [#allocation5], 4
      %s36 = int_to_ptr.vmem [resolvable:$true] %s35
      %38 = dma.hbm_to_vmem [thread:$0]  %s34, 128, %s36, [#allocation6]
    $region13: #{tpu_custom_call.1} parent=1 // pred_fallthru
      _
    // Predicated region
    $region14: #{tpu_custom_call.1} parent=1 // pred_check
      _
    $region15: #{tpu_custom_call.1} parent=1 // pred_check_branch
      %40 = sbr.rel (0) target = $region17
    $region16: #{tpu_custom_call.1} parent=1 // pred_region
      _
    $region17: #{tpu_custom_call.1} parent=1 // pred_fallthru
      _
    // Predicated region
    $region18: #{tpu_custom_call.1} parent=1 // pred_check
      _
    $region19: #{tpu_custom_call.1} parent=1 // pred_check_branch
      %42 = sbr.rel (0) target = $region21
    $region20: #{tpu_custom_call.1} parent=1 // pred_region
      _
    $region21: #{tpu_custom_call.1} parent=1 // pred_fallthru
      _
    // Predicated region
    $region22: #{tpu_custom_call.1} parent=1 // pred_check
      _
    $region23: #{tpu_custom_call.1} parent=1 // pred_check_branch
      %44 = sbr.rel (0) target = $region25
    $region24: #{tpu_custom_call.1} parent=1 // pred_region
      %46 = dma.done [#allocation3], 256
    $region25: #{tpu_custom_call.1} parent=1 // pred_fallthru
      _
    // Predicated region
    $region26: #{tpu_custom_call.1} parent=1 // pred_check
      _
    $region27: #{tpu_custom_call.1} parent=1 // pred_check_branch
      %48 = sbr.rel (0) target = $region29
    $region28: #{tpu_custom_call.1} parent=1 // pred_region
      %50 = dma.done [#allocation6], 128
    $region29: #{tpu_custom_call.1} parent=1 // pred_fallthru
      _
    %v51 = vld [vmem:[#allocation5] sm:$0x3]
    %v52 = vcvt.f32.s32.to.zero.pseudo %v51
    %v53 = vld [vmem:[#allocation5] sm:$0xf]
    %v54 = vld [vmem:[#allocation5 + $0x6] sm:$0x1]
    %v55 = vld [vmem:[#allocation5 + $0x7] sm:$0x1]
    %v56 = vlaneseq
    %v57 = vand.u32 %v56, 127
    %v58 = vlaneseq
    %v59 = vshrl.u32 %v58, 7
    %v60 = vmul.u32 %v59, 8
    %v61 = vsub.s32 %v57, %v60
    %vm62 = vcmp.ge.s32.totalorder %v61, 0
    %vm63 = vcmp.lt.s32.totalorder %v61, 8
    %vm64 = vmand %vm62, %vm63
    %65 = vset.pattern.permute.xlu0 0
    %66 = vperm.xlu0 %65, %v52
    %v67 = vpop.permute.xlu0 %66
    %vm68 = vcmp.lt.s32.totalorder %v61, %v67
    %vm69 = vmand %vm64, %vm68
    %v70 = vsel %vm69, 1, 0
    %v71 = vcvt.s32.f32 %v70
    %73 = vset.pattern.permute.xlu0 2
    %74 = vperm.xlu0 %73, %v51
    %v75 = vpop.permute.xlu0 %74
    %v77 = vmul.f32 %v71, %v75
    %78 = vset.pattern.permute.xlu0 1
    %79 = vperm.xlu0 %78, %v52
    %v80 = vpop.permute.xlu0 %79
    %vm81 = vcmp.lt.s32.totalorder %v61, %v80
    %vm82 = vmand %vm64, %vm81
    %v83 = vsel %vm82, 1, 0
    %v84 = vcvt.s32.f32 %v83
    %85 = vset.pattern.permute.xlu0 3
    %86 = vperm.xlu0 %85, %v51
    %v87 = vpop.permute.xlu0 %86
    %v89 = vmul.f32 %v84, %v87
    %v90 = vld [vmem:[%s0] sm:$0xff]
    %v91 = vld [vmem:[%s0 + $0x8] sm:$0xff]
    %vm92 = vcmask 130048
    %v94 = vsel %vm92, %v77, 0
    %96 = vmatpush.msra.mxu0 0.0
    %97 = vmatpush.msra.mxu0 0.0
    %98 = vmatpush.msra.mxu0 0.0
    %99 = vmatpush.msra.mxu0 0.0
    %100 = vmatpush.msra.mxu0 0.0
    %101 = vmatpush.msra.mxu0 0.0
    %102 = vmatpush.msra.mxu0 0.0
    %103 = vmatpush.msra.mxu0 0.0
    %104 = vmatpush.msra.mxu0 0.0
    %105 = vmatpush.msra.mxu0 0.0
    %106 = vmatpush.msra.mxu0 0.0
    %107 = vmatpush.msra.mxu0 0.0
    %108 = vmatpush.msra.mxu0 0.0
    %109 = vmatpush.msra.mxu0 0.0
    %110 = vmatpush.msra.mxu0 %v91
    %111 = vmatpush.msra.mxu0 %v90
    %112 = vmatmul.f32.gmra.mxu0 %v94
    %v113 = vpop.f32.mrf.mxu0
    %v114 = vadd.f32 0.0, %v113
    %115 = vdwg.mxu0
    %v116 = vld [vmem:[#allocation2] sm:$0xff]
    %v117 = vld [vmem:[#allocation2 + $0x8] sm:$0xff]
    %v119 = vsel %vm92, %v89, 0
    %121 = vmatpush.msra.mxu0 0.0
    %122 = vmatpush.msra.mxu0 0.0
    %123 = vmatpush.msra.mxu0 0.0
    %124 = vmatpush.msra.mxu0 0.0
    %125 = vmatpush.msra.mxu0 0.0
    %126 = vmatpush.msra.mxu0 0.0
    %127 = vmatpush.msra.mxu0 0.0
    %128 = vmatpush.msra.mxu0 0.0
    %129 = vmatpush.msra.mxu0 0.0
    %130 = vmatpush.msra.mxu0 0.0
    %131 = vmatpush.msra.mxu0 0.0
    %132 = vmatpush.msra.mxu0 0.0
    %133 = vmatpush.msra.mxu0 0.0
    %134 = vmatpush.msra.mxu0 0.0
    %135 = vmatpush.msra.mxu0 %v117
    %136 = vmatpush.msra.mxu0 %v116
    %137 = vmatmul.f32.gmra.mxu0 %v119
    %v138 = vpop.f32.mrf.mxu0
    %v139 = vadd.f32 0.0, %v138
    %140 = vdwg.mxu0
    %v141 = vld [vmem:[%s3] sm:$0xff]
    %v142 = vld [vmem:[%s3 + $0x8] sm:$0xff]
    %v143 = vld [vmem:[%s3 + $0x10] sm:$0xff]
    %v144 = vld [vmem:[%s3 + $0x18] sm:$0xff]
    %v146 = vsel %vm92, %v139, 0
    %148 = vmatpush.msra.mxu0 0.0
    %149 = vmatpush.msra.mxu0 0.0
    %150 = vmatpush.msra.mxu0 0.0
    %151 = vmatpush.msra.mxu0 0.0
    %152 = vmatpush.msra.mxu0 0.0
    %153 = vmatpush.msra.mxu0 0.0
    %154 = vmatpush.msra.mxu0 0.0
    %155 = vmatpush.msra.mxu0 0.0
    %156 = vmatpush.msra.mxu0 0.0
    %157 = vmatpush.msra.mxu0 0.0
    %158 = vmatpush.msra.mxu0 0.0
    %159 = vmatpush.msra.mxu0 0.0
    %160 = vmatpush.msra.mxu0 0.0
    %161 = vmatpush.msra.mxu0 0.0
    %162 = vmatpush.msra.mxu0 %v144
    %163 = vmatpush.msra.mxu0 %v143
    %164 = vmatmul.f32.gmra.mxu0 %v146
    %v165 = vpop.f32.mrf.mxu0
    %v166 = vadd.f32 0.0, %v165
    %167 = vdwg.mxu0
    %v169 = vsel %vm92, %v114, 0
    %171 = vmatpush.msra.mxu0 0.0
    %172 = vmatpush.msra.mxu0 0.0
    %173 = vmatpush.msra.mxu0 0.0
    %174 = vmatpush.msra.mxu0 0.0
    %175 = vmatpush.msra.mxu0 0.0
    %176 = vmatpush.msra.mxu0 0.0
    %177 = vmatpush.msra.mxu0 0.0
    %178 = vmatpush.msra.mxu0 0.0
    %179 = vmatpush.msra.mxu0 0.0
    %180 = vmatpush.msra.mxu0 0.0
    %181 = vmatpush.msra.mxu0 0.0
    %182 = vmatpush.msra.mxu0 0.0
    %183 = vmatpush.msra.mxu0 0.0
    %184 = vmatpush.msra.mxu0 0.0
    %185 = vmatpush.msra.mxu0 %v142
    %186 = vmatpush.msra.mxu0 %v141
    %187 = vmatmul.f32.gmra.mxu0 %v169
    %v188 = vpop.f32.mrf.mxu0
    %v189 = vadd.f32 %v166, %v188
    %190 = vdwg.mxu0
    %v191 = vperm.slane %v54, 0
    %v192 = vadd.f32 %v189, %v191
    %v193 = vtanh.pop %v192
    %v194 = vld [vmem:[%s4] sm:$0xff]
    %v195 = vld [vmem:[%s4 + $0x8] sm:$0xff]
    %v196 = vld [vmem:[%s4 + $0x10] sm:$0xff]
    %v197 = vld [vmem:[%s4 + $0x18] sm:$0xff]
    %v198 = vperm.slane %v55, 0
    %vm199 = vcmask 261120
    %v201 = vsel %vm199, %v193, 0
    %203 = vmatpush.msra.mxu0 0.0
    %204 = vmatpush.msra.mxu0 0.0
    %205 = vmatpush.msra.mxu0 0.0
    %206 = vmatpush.msra.mxu0 0.0
    %207 = vmatpush.msra.mxu0 0.0
    %208 = vmatpush.msra.mxu0 0.0
    %209 = vmatpush.msra.mxu0 0.0
    %210 = vmatpush.msra.mxu0 0.0
    %211 = vmatpush.msra.mxu0 0.0
    %212 = vmatpush.msra.mxu0 0.0
    %213 = vmatpush.msra.mxu0 0.0
    %214 = vmatpush.msra.mxu0 0.0
    %215 = vmatpush.msra.mxu0 %v197
    %216 = vmatpush.msra.mxu0 %v196
    %217 = vmatpush.msra.mxu0 %v195
    %218 = vmatpush.msra.mxu0 %v194
    %219 = vmatmul.f32.gmra.mxu0 %v201
    %v220 = vpop.f32.mrf.mxu0
    %v221 = vadd.f32 %v198, %v220
    %222 = vdwg.mxu0
    %v223 = vmul.f32 %v221, %v221
    %vm224 = vcmask 123904
    %v225 = vsel %vm224, %v223, 0.0
    %226 = vadd.xlane.f32.xlu0 %v225
    %v227 = vpop.xlane.xlu0 %226
    %v228 = vadd.f32 %v227, 1e-12
    %v229 = vrsqrt.pop %v228
    %v230 = vmul.f32 %v229, %v228
    %v231 = vmul.f32 %v230, %v229
    %v232 = vmul.f32 0.5, %v231
    %v233 = vsub.f32 1.5, %v232
    %v234 = vmul.f32 %v229, %v233
    %vm235 = vweird.f32 %v228
    %vm236 = vweird.f32 %v229
    %vm237 = vmor %vm235, %vm236
    %v238 = vsel %vm237, %v229, %v234
    %v239 = vmul.f32 %v221, %v238
    %v240 = vrsqrt.pop %v228
    %v241 = vmul.f32 %v240, %v228
    %v242 = vmul.f32 %v241, %v240
    %v243 = vmul.f32 0.5, %v242
    %v244 = vsub.f32 1.5, %v243
    %v245 = vmul.f32 %v240, %v244
    %v246 = vmul.f32 %v228, %v245
    %vm247 = vcmp.eq.f32.partialorder %v228, inf
    %v248 = vsel %vm247, %v228, %v246
    %vm249 = vcmp.eq.f32.partialorder %v228, 0.0
    %v250 = vand.u32 %v228, 2147483648
    %v251 = vsel %vm249, %v250, %v248
    %v252 = vsub.f32 %v251, 1.0
    %v253 = vmul.f32 %v252, %v252
    %v255 = vrot.slane %v239, 7
    %v257 = vrot.slane %v239, 6
    %vm259 = vcmask 1040384
    %v260 = vsel %vm259, %v239, %v255
    %vm261 = vcmask 1041408
    %v262 = vsel %vm261, %v260, %v255
    %vm263 = vcmask 1042432
    %v264 = vsel %vm263, %v262, %v257
    %266 = vrot.lane.b32.xlu0 %v264, 8
    %v267 = vpop.permute.xlu0 %266
    %v269 = vmul.f32 %v53, %v267
    %271 = vrot.lane.b32.xlu0 %v269, 120
    %v272 = vpop.permute.xlu0 %271
    %vm274 = vcmask 125952
    %v275 = vsel %vm274, %v272, 0.0
    %276 = vadd.xlane.f32.xlu0 %v275
    %v277 = vpop.xlane.xlu0 %276
    %v278 = vmul.f32 %v277, %v264
    %280 = vrot.lane.b32.xlu0 %v278, 8
    %v281 = vpop.permute.xlu0 %280
    %v283 = vsub.f32 %v53, %v281
    %v284 = vmul.f32 %v283, %v283
    %286 = vrot.lane.b32.xlu0 %v284, 120
    %v287 = vpop.permute.xlu0 %286
    %v289 = vsel %vm274, %v287, 0.0
    %290 = vadd.xlane.f32.xlu0 %v289
    %v291 = vpop.xlane.xlu0 %290
    %v292 = vadd.f32 %v291, 1e-12
    %v293 = vrsqrt.pop %v292
    %v294 = vmul.f32 %v293, %v292
    %v295 = vmul.f32 %v294, %v293
    %v296 = vmul.f32 0.5, %v295
    %v297 = vsub.f32 1.5, %v296
    %v298 = vmul.f32 %v293, %v297
    %vm299 = vweird.f32 %v292
    %vm300 = vweird.f32 %v293
    %vm301 = vmor %vm299, %vm300
    %v302 = vsel %vm301, %v293, %v298
    %v303 = vmul.f32 %v283, %v302
    %305 = vset.pattern.permute.xlu0 4
    %306 = vperm.xlu0 %305, %v53
    %v307 = vpop.permute.xlu0 %306
    %v309 = vmul.f32 %v307, %v264
    %310 = vset.pattern.permute.xlu0 5
    %311 = vperm.xlu0 %310, %v53
    %v312 = vpop.permute.xlu0 %311
    %v314 = vmul.f32 %v312, %v303
    %316 = vrot.lane.b32.xlu0 %v314, 120
    %v317 = vpop.permute.xlu0 %316
    %v319 = vadd.f32 %v309, %v317
    %v320 = vsel %vm92, %v239, %v253
    %v321 = vsel %vm92, %v319, 0.0
    %vm322 = vcmask 138240
    %v323 = vsel %vm322, %v320, 0.0
    %v325 = vrot.slane %v323, 4
    %vm327 = vcmask 1043456
    %v328 = vsel %vm327, %v321, %v325
    %vm329 = vcmask 1045504
    %v330 = vsel %vm329, %v328, 0.0
    %331 = vst [vmem:[#allocation7] sm:$0xff] %v330
    // Predicated region
    $region30: #{tpu_custom_call.1} parent=1 // pred_check
      _
    $region31: #{tpu_custom_call.1} parent=1 // pred_check_branch
      %333 = sbr.rel (0) target = $region33
    $region32: #{tpu_custom_call.1} parent=1 // pred_region
      %335 = vsyncadd [#allocation4], 0
      %s337 = sshll.u32 [#allocation7], 4
      %s338 = int_to_ptr.vmem [resolvable:$true] %s337
      %s339 = sshll.u32 %s5, 4
      %s340 = int_to_ptr.hbm [resolvable:$true] %s339
      %342 = dma.vmem_to_hbm [thread:$0]  %s338, 128, %s340, [#allocation4]
    $region33: #{tpu_custom_call.1} parent=1 // pred_fallthru
      _
    // Predicated region
    $region34: #{tpu_custom_call.1} parent=1 // pred_check
      _
    $region35: #{tpu_custom_call.1} parent=1 // pred_check_branch
      %344 = sbr.rel (0) target = $region37
    $region36: #{tpu_custom_call.1} parent=1 // pred_region
      %346 = dma.done [#allocation4], 128
    $region37: #{tpu_custom_call.1} parent=1 // pred_fallthru
      _
    %347 = vsyncpa [#allocation3], 1
    %348 = vsyncpa [#allocation6], 1
    %349 = vsyncpa [#allocation4], 1

</llo_original>
